<compile_context>
chip_gen: v5e
topology: v5e:2x2
jax: 0.10.0
libtpu: 0.0.40
codegen_flags: <defaults>
</compile_context>

<pallas_src>
import jax
import jax.numpy as jnp
from jax.experimental import pallas as pl
from jax.experimental.pallas import tpu as pltpu

LANE = 128
_V7X_SAFE_VMEM = 48 << 20   # conservative budget for v7x's 64 MiB VMEM per TC


def _round_up(x, m):
    return (x + m - 1) // m * m


def gcn_fused_kernel(a_ref, x_ref, w1_ref, w2_ref, o_ref):
    """Fused 2-layer GCN forward, fully VMEM-resident:
         h   = relu(A_norm @ (X @ W1))
         out = A_norm @ (h @ W2)
    All four matmuls run on the MXU with bf16 operands / f32 accumulation.
    """
    a = a_ref[...]            # [Np, Np] bf16 (normalized adjacency), read once

    # --- layer 1 (hid -> hid): X @ W1 first, then aggregate ------------------
    xw1 = jnp.dot(x_ref[...], w1_ref[...], preferred_element_type=jnp.float32)
    h = jnp.dot(a, xw1.astype(jnp.bfloat16), preferred_element_type=jnp.float32)
    # ReLU on the bf16 value (relu commutes with the downcast, preserves zero).
    h = jnp.maximum(h.astype(jnp.bfloat16), 0)

    # --- layer 2 (hid -> out, out <= hid): reassociated A @ (h @ W2) ---------
    hw2 = jnp.dot(h, w2_ref[...], preferred_element_type=jnp.float32)
    out = jnp.dot(a, hw2.astype(jnp.bfloat16), preferred_element_type=jnp.float32)

    o_ref[...] = out.astype(o_ref.dtype)


def prepare_gcn_params(w1, w2):
    """One-time (init) conversion of the GraphConv weights to MXU operand dtype.
    No feature-dim padding: full-extent blocks are legal and padding out_feats
    to 128 would only add redundant layer-2 MXU work."""
    return w1.astype(jnp.bfloat16), w2.astype(jnp.bfloat16)


def gcn_forward(a_p, x, w1_b, w2_b):
    """Full GCN forward: relu(conv1) -> conv2, one fused pallas_call.

    a_p:   [Np, Np] bf16 normalized adjacency, node dim already padded (init-time)
    x:     [N, hid] features (any float dtype; cast to bf16 here — tiny op)
    w1_b:  [hid, hid] bf16 (init-time prepared)
    w2_b:  [hid, out] bf16 (init-time prepared)
    returns [N, out] float32
    """
    n, hid = x.shape
    out_f = w2_b.shape[1]
    n_p = a_p.shape[0]

    # Per-call prep: only pad the node dim when it is actually unaligned
    # (at N=128 this is a pure bf16 cast of a 128x32 array).
    x_p = x.astype(jnp.bfloat16)
    if n_p != n:
        x_p = jnp.pad(x_p, ((0, n_p - n), (0, 0)))

    # VMEM residency guard: double-buffered inputs + output + f32 intermediates.
    vmem_est = (2 * (a_p.size * 2 + n_p * hid * 2 + w1_b.size * 2 + w2_b.size * 2)
                + 2 * n_p * out_f * 4
                + 4 * n_p * max(hid, out_f) * 4)
    if vmem_est > _V7X_SAFE_VMEM:
        # TODO(synk): per-layer row-tiled kernels for large graphs: 256-aligned
        # MXU tiles on v6e/v7x, node-row grid axis marked "parallel" for v7x
        # megacore, W1/W2 VMEM-resident across the row grid, and block-sparse A
        # via scalar-prefetched block-row ids (PrefetchScalarGridSpec).
        raise NotImplementedError(
            "graph too large for the fully VMEM-resident fused GCN kernel")

    flops = 2 * (n_p * hid * hid + n_p * n_p * hid
                 + n_p * hid * out_f + n_p * n_p * out_f)
    bytes_accessed = (a_p.size * 2 + n_p * hid * 2 + w1_b.size * 2
                      + w2_b.size * 2 + n_p * out_f * 4)

    out_p = pl.pallas_call(
        gcn_fused_kernel,
        out_shape=jax.ShapeDtypeStruct((n_p, out_f), jnp.float32),
        grid=(1,),
        in_specs=[
            pl.BlockSpec((n_p, n_p), lambda i: (0, 0)),    # A_norm (bf16)
            pl.BlockSpec((n_p, hid), lambda i: (0, 0)),    # X       (bf16)
            pl.BlockSpec((hid, hid), lambda i: (0, 0)),    # W1      (bf16)
            pl.BlockSpec((hid, out_f), lambda i: (0, 0)),  # W2      (bf16)
        ],
        out_specs=pl.BlockSpec((n_p, out_f), lambda i: (0, 0)),
        compiler_params=pltpu.CompilerParams(
            dimension_semantics=("arbitrary",),
            vmem_limit_bytes=min(max(2 * vmem_est, 32 << 20), _V7X_SAFE_VMEM)),
        cost_estimate=pl.CostEstimate(
            flops=flops, transcendentals=0, bytes_accessed=bytes_accessed),
    )(a_p, x_p, w1_b, w2_b)

    return out_p[:n, :]


def build_graph(key, n_nodes, n_pad):
    """Random directed graph.  Returns:
       a_norm   [N, N]  f32  GCN-normalized adjacency (for the f32 reference)
       a_p      [Np,Np] bf16 node-padded copy consumed by the kernel (built ONCE
                              here so the hot path never re-pads / re-casts A)
    A_norm[i, j] = A[i, j] / sqrt(deg_in(i) * deg_out(j)), degrees clamped to 1
    (matching allow_zero_in_degree=True; orientation matches the f32 reference).
    """
    a = jax.random.bernoulli(key, p=0.2, shape=(n_nodes, n_nodes)).astype(jnp.float32)
    a = a * (1.0 - jnp.eye(n_nodes, dtype=jnp.float32))           # no self-loops
    deg_in = jnp.clip(a.sum(axis=1, keepdims=True), 1.0, None)    # [N, 1]
    deg_out = jnp.clip(a.sum(axis=0, keepdims=True), 1.0, None)   # [1, N]
    a_norm = a / jnp.sqrt(deg_in * deg_out)

    # TODO(synk): for graphs where bf16 aggregation error matters (large / dense),
    # keep A in f32 for the aggregation matmuls or split into a hi/lo bf16 pair.
    a_p = a_norm.astype(jnp.bfloat16)
    if n_pad != n_nodes:
        a_p = jnp.pad(a_p, ((0, n_pad - n_nodes), (0, n_pad - n_nodes)))
    return a_norm, a_p


def xavier(key, fin, fout):
    bound = (6.0 / (fin + fout)) ** 0.5
    return jax.random.uniform(key, (fin, fout), jnp.float32, -bound, bound)


def gcn_forward_ref(a_norm, x, w1, w2):
    """Pure-JAX f32 reference of the module's forward."""
    h = jnp.maximum(a_norm @ (x @ w1), 0.0)
    return a_norm @ (h @ w2)


if __name__ == "__main__":
    N_NODES = 128
    IN_FEATS = 32    # unused in practice: the duplicated conv1 makes inputs hid-sized
    HID_FEATS = 32
    OUT_FEATS = 16

    key = jax.random.PRNGKey(0)
    k_graph, k_feat, k_w1, k_w2 = jax.random.split(key, 4)

    n_p = _round_up(N_NODES, LANE)

    # --- init-time (done once): graph normalization in bf16, weight prep -----
    a_norm_f32, a_p = build_graph(k_graph, N_NODES, n_p)              # [N,N], [Np,Np]
    w1 = xavier(k_w1, HID_FEATS, HID_FEATS)                           # conv1 weight
    w2 = xavier(k_w2, HID_FEATS, OUT_FEATS)                           # conv2 weight
    w1_b, w2_b = prepare_gcn_params(w1, w2)

    x = jax.random.normal(k_feat, (N_NODES, HID_FEATS), jnp.float32)  # [N, hid]

    gcn_fn = jax.jit(gcn_forward)
    out = gcn_fn(a_p, x, w1_b, w2_b)
    out = jax.block_until_ready(out)

    assert out.shape == (N_NODES, OUT_FEATS)
    assert out.dtype == jnp.float32

    # loose numerical sanity check vs f32 reference (kernel uses bf16 operands)
    ref = gcn_forward_ref(a_norm_f32, x, w1, w2)
    err = float(jnp.max(jnp.abs(out - ref)))
    scale = float(jnp.max(jnp.abs(ref)))
    assert err <= 0.1 * scale + 0.1, (err, scale)

    print("KERNEL_OK")
</pallas_src>

<mosaic_0001>
module attributes {stable_mosaic.version = 11 : i64} {
  func.func @gcn_fused_kernel(%arg0: i32, %arg1: memref<128x128xbf16, #tpu.memory_space<vmem>>, %arg2: memref<128x32xbf16, #tpu.memory_space<vmem>>, %arg3: memref<32x32xbf16, #tpu.memory_space<vmem>>, %arg4: memref<32x16xbf16, #tpu.memory_space<vmem>>, %arg5: memref<128x16xf32, #tpu.memory_space<vmem>>) attributes {dimension_semantics = [#tpu.dimension_semantics<arbitrary>], iteration_bounds = array<i64: 1>, scalar_prefetch = 0 : i64, scratch_operands = 0 : i64, tpu.core_type = #tpu.core_type<tc>, window_params = [{pipeline_mode = #tpu.pipeline_mode<synchronous>, transform_indices = @transform_0, window_bounds = array<i64: 128, 128>}, {pipeline_mode = #tpu.pipeline_mode<synchronous>, transform_indices = @transform_1, window_bounds = array<i64: 128, 32>}, {pipeline_mode = #tpu.pipeline_mode<synchronous>, transform_indices = @transform_2, window_bounds = array<i64: 32, 32>}, {pipeline_mode = #tpu.pipeline_mode<synchronous>, transform_indices = @transform_3, window_bounds = array<i64: 32, 16>}, {pipeline_mode = #tpu.pipeline_mode<synchronous>, transform_indices = @transform_4, window_bounds = array<i64: 128, 16>}]} {
    %c0 = arith.constant 0 : index
    %c0_0 = arith.constant 0 : index
    %0 = vector.load %arg1[%c0, %c0_0] : memref<128x128xbf16, #tpu.memory_space<vmem>>, vector<128x128xbf16>
    %c0_1 = arith.constant 0 : index
    %c0_2 = arith.constant 0 : index
    %1 = vector.load %arg2[%c0_1, %c0_2] : memref<128x32xbf16, #tpu.memory_space<vmem>>, vector<128x32xbf16>
    %c0_3 = arith.constant 0 : index
    %c0_4 = arith.constant 0 : index
    %2 = vector.load %arg3[%c0_3, %c0_4] : memref<32x32xbf16, #tpu.memory_space<vmem>>, vector<32x32xbf16>
    %cst = arith.constant dense<0.000000e+00> : vector<128x32xf32>
    %3 = tpu.matmul %1, %2, %cst {dimension_numbers = #tpu.dot_dimension_numbers<[1], [0], [0], [1], [0, 0, 1, 1], [], []>} : vector<128x32xbf16>, vector<32x32xbf16>, vector<128x32xf32> -> vector<128x32xf32>
    %4 = arith.truncf %3 : vector<128x32xf32> to vector<128x32xbf16>
    %cst_5 = arith.constant dense<0.000000e+00> : vector<128x32xf32>
    %5 = tpu.matmul %0, %4, %cst_5 {dimension_numbers = #tpu.dot_dimension_numbers<[1], [0], [0], [1], [0, 0, 1, 1], [], []>} : vector<128x128xbf16>, vector<128x32xbf16>, vector<128x32xf32> -> vector<128x32xf32>
    %6 = arith.truncf %5 : vector<128x32xf32> to vector<128x32xbf16>
    %cst_6 = arith.constant 0.000000e+00 : bf16
    %7 = vector.broadcast %cst_6 : bf16 to vector<128x32xbf16>
    %8 = arith.maximumf %6, %7 : vector<128x32xbf16>
    %c0_7 = arith.constant 0 : index
    %c0_8 = arith.constant 0 : index
    %9 = vector.load %arg4[%c0_7, %c0_8] : memref<32x16xbf16, #tpu.memory_space<vmem>>, vector<32x16xbf16>
    %cst_9 = arith.constant dense<0.000000e+00> : vector<128x16xf32>
    %10 = tpu.matmul %8, %9, %cst_9 {dimension_numbers = #tpu.dot_dimension_numbers<[1], [0], [0], [1], [0, 0, 1, 1], [], []>} : vector<128x32xbf16>, vector<32x16xbf16>, vector<128x16xf32> -> vector<128x16xf32>
    %11 = arith.truncf %10 : vector<128x16xf32> to vector<128x16xbf16>
    %cst_10 = arith.constant dense<0.000000e+00> : vector<128x16xf32>
    %12 = tpu.matmul %0, %11, %cst_10 {dimension_numbers = #tpu.dot_dimension_numbers<[1], [0], [0], [1], [0, 0, 1, 1], [], []>} : vector<128x128xbf16>, vector<128x16xbf16>, vector<128x16xf32> -> vector<128x16xf32>
    %c0_11 = arith.constant 0 : index
    %c0_12 = arith.constant 0 : index
    %13 = vector.load %arg5[%c0_11, %c0_12] : memref<128x16xf32, #tpu.memory_space<vmem>>, vector<128x16xf32>
    tpu.vector_store %arg5[%c0_11, %c0_12], %12 {strides = array<i32>} : memref<128x16xf32, #tpu.memory_space<vmem>>, vector<128x16xf32>,
    return
  }
  func.func @transform_0(%arg0: i32) -> (i32, i32) {
    %c0_i32 = arith.constant 0 : i32
    %c0_i32_0 = arith.constant 0 : i32
    %c0_i32_1 = arith.constant 0 : i32
    return %c0_i32, %c0_i32_0 : i32, i32
  }
  func.func @transform_1(%arg0: i32) -> (i32, i32) {
    %c0_i32 = arith.constant 0 : i32
    %c0_i32_0 = arith.constant 0 : i32
    %c0_i32_1 = arith.constant 0 : i32
    return %c0_i32, %c0_i32_0 : i32, i32
  }
  func.func @transform_2(%arg0: i32) -> (i32, i32) {
    %c0_i32 = arith.constant 0 : i32
    %c0_i32_0 = arith.constant 0 : i32
    %c0_i32_1 = arith.constant 0 : i32
    return %c0_i32, %c0_i32_0 : i32, i32
  }
  func.func @transform_3(%arg0: i32) -> (i32, i32) {
    %c0_i32 = arith.constant 0 : i32
    %c0_i32_0 = arith.constant 0 : i32
    %c0_i32_1 = arith.constant 0 : i32
    return %c0_i32, %c0_i32_0 : i32, i32
  }
  func.func @transform_4(%arg0: i32) -> (i32, i32) {
    %c0_i32 = arith.constant 0 : i32
    %c0_i32_0 = arith.constant 0 : i32
    %c0_i32_1 = arith.constant 0 : i32
    return %c0_i32, %c0_i32_0 : i32, i32
  }
}

</mosaic_0001>

<llo_original>
// kernel: gcn_forward.1
$region0: #{gcn_forward.1}
  #allocation0 [shape = 'u32[]', space=smem, size = 0x4, offset = 0x4, fixed_abs, tag = 'smem constant byte address 0x4 - core index']
  #allocation1 [shape = 'u32[72,128]{1,0:T(1,128)}', space=vmem, size = 0x9000, scoped, tag = 'internal scratch']
  %s0 = inlined_call_operand.vmem [shape: bf16[128,128], index: 0, kind: input, shape index: {}]
  %s1 = inlined_call_operand.vmem [shape: bf16[128,32], index: 1, kind: input, shape index: {}]
  %s2 = inlined_call_operand.vmem [shape: bf16[32,32], index: 2, kind: input, shape index: {}]
  %s3 = inlined_call_operand.vmem [shape: bf16[32,16], index: 3, kind: input, shape index: {}]
  %s4 = inlined_call_operand.vmem [shape: f32[128,16], index: 4, kind: output, shape index: {}]
  %s5 = sld [smem:[#allocation0]]
  $region26: #{gcn_forward.1} parent=0
    _
  %s7 = ssub.s32 1, %s5
  %s8 = scalar_select 0, %s7, %s5
  // Predicated region
  $region2: #{gcn_forward.1} parent=0 // pred_check
    _
  $region3: #{gcn_forward.1} parent=0 // pred_check_branch
    %10 = sbr.rel (0) target = $region5
  $region4: #{gcn_forward.1} parent=0 // pred_region
    _
  $region5: #{gcn_forward.1} parent=0 // pred_fallthru
    _
  // Predicated region
  $region6: #{gcn_forward.1} parent=0 // pred_check
    _
  $region7: #{gcn_forward.1} parent=0 // pred_check_branch
    %12 = sbr.rel (0) target = $region9
  $region8: #{gcn_forward.1} parent=0 // pred_region
    _
  $region9: #{gcn_forward.1} parent=0 // pred_fallthru
    _
  // Predicated region
  $region10: #{gcn_forward.1} parent=0 // pred_check
    _
  $region11: #{gcn_forward.1} parent=0 // pred_check_branch
    %14 = sbr.rel (0) target = $region13
  $region12: #{gcn_forward.1} parent=0 // pred_region
    _
  $region13: #{gcn_forward.1} parent=0 // pred_fallthru
    _
  // Predicated region
  $region14: #{gcn_forward.1} parent=0 // pred_check
    _
  $region15: #{gcn_forward.1} parent=0 // pred_check_branch
    %16 = sbr.rel (0) target = $region17
  $region16: #{gcn_forward.1} parent=0 // pred_region
    _
  $region17: #{gcn_forward.1} parent=0 // pred_fallthru
    _
  %v18 = vld [vmem:[%s0] sm:$0xf]
  %v19 = vld [vmem:[%s0 + $0x4] sm:$0xf]
  %v20 = vld [vmem:[%s0 + $0x8] sm:$0xf]
  %v21 = vld [vmem:[%s0 + $0xc] sm:$0xf]
  %v22 = vld [vmem:[%s0 + $0x10] sm:$0xf]
  %v23 = vld [vmem:[%s0 + $0x14] sm:$0xf]
  %v24 = vld [vmem:[%s0 + $0x18] sm:$0xf]
  %v25 = vld [vmem:[%s0 + $0x1c] sm:$0xf]
  %v26 = vld [vmem:[%s0 + $0x20] sm:$0xf]
  %v27 = vld [vmem:[%s0 + $0x24] sm:$0xf]
  %v28 = vld [vmem:[%s0 + $0x28] sm:$0xf]
  %v29 = vld [vmem:[%s0 + $0x2c] sm:$0xf]
  %v30 = vld [vmem:[%s0 + $0x30] sm:$0xf]
  %v31 = vld [vmem:[%s0 + $0x34] sm:$0xf]
  %v32 = vld [vmem:[%s0 + $0x38] sm:$0xf]
  %v33 = vld [vmem:[%s0 + $0x3c] sm:$0xf]
  %v34 = vld [vmem:[%s1] sm:$0xf]
  %v35 = vld [vmem:[%s1 + $0x4] sm:$0xf]
  %v36 = vld [vmem:[%s1 + $0x8] sm:$0xf]
  %v37 = vld [vmem:[%s1 + $0xc] sm:$0xf]
  %v38 = vld [vmem:[%s1 + $0x10] sm:$0xf]
  %v39 = vld [vmem:[%s1 + $0x14] sm:$0xf]
  %v40 = vld [vmem:[%s1 + $0x18] sm:$0xf]
  %v41 = vld [vmem:[%s1 + $0x1c] sm:$0xf]
  %v42 = vld [vmem:[%s1 + $0x20] sm:$0xf]
  %v43 = vld [vmem:[%s1 + $0x24] sm:$0xf]
  %v44 = vld [vmem:[%s1 + $0x28] sm:$0xf]
  %v45 = vld [vmem:[%s1 + $0x2c] sm:$0xf]
  %v46 = vld [vmem:[%s1 + $0x30] sm:$0xf]
  %v47 = vld [vmem:[%s1 + $0x34] sm:$0xf]
  %v48 = vld [vmem:[%s1 + $0x38] sm:$0xf]
  %v49 = vld [vmem:[%s1 + $0x3c] sm:$0xf]
  %v50 = vld [vmem:[%s2] sm:$0xf]
  %v51 = vld [vmem:[%s2 + $0x4] sm:$0xf]
  %v52 = vld [vmem:[%s2 + $0x8] sm:$0xf]
  %v53 = vld [vmem:[%s2 + $0xc] sm:$0xf]
  %v70 = vunpack.c.l.b16 %v34
  %v71 = vunpack.c.l.b16 %v35
  %v72 = vunpack.c.l.b16 %v36
  %v73 = vunpack.c.l.b16 %v37
  %v74 = vunpack.c.l.b16 %v38
  %v75 = vunpack.c.l.b16 %v39
  %v76 = vunpack.c.l.b16 %v40
  %v77 = vunpack.c.l.b16 %v41
  %v78 = vunpack.c.l.b16 %v42
  %v79 = vunpack.c.l.b16 %v43
  %v80 = vunpack.c.l.b16 %v44
  %v81 = vunpack.c.l.b16 %v45
  %v82 = vunpack.c.l.b16 %v46
  %v83 = vunpack.c.l.b16 %v47
  %v84 = vunpack.c.l.b16 %v48
  %v85 = vunpack.c.l.b16 %v49
  %v86 = vpack.c.b16 %v71, %v70
  %v87 = vpack.c.b16 %v73, %v72
  %v88 = vpack.c.b16 %v75, %v74
  %v89 = vpack.c.b16 %v77, %v76
  %v90 = vpack.c.b16 %v79, %v78
  %v91 = vpack.c.b16 %v81, %v80
  %v92 = vpack.c.b16 %v83, %v82
  %v93 = vpack.c.b16 %v85, %v84
  %v98 = vunpack.c.l.b16 %v50
  %v99 = vunpack.c.l.b16 %v51
  %v100 = vunpack.c.l.b16 %v52
  %v101 = vunpack.c.l.b16 %v53
  %v102 = vpack.c.b16 %v99, %v98
  %v103 = vpack.c.b16 %v101, %v100
  %vm106 = vcmask 261120
  %v108 = vsel %vm106, %v86, 0
  %v111 = vsel %vm106, %v87, 0
  %v114 = vsel %vm106, %v88, 0
  %v117 = vsel %vm106, %v89, 0
  %v120 = vsel %vm106, %v90, 0
  %v123 = vsel %vm106, %v91, 0
  %v126 = vsel %vm106, %v92, 0
  %v129 = vsel %vm106, %v93, 0
  %131 = vmatpush.bf16.msra.mxu0 0
  %132 = vmatpush.bf16.msra.mxu0 0
  %133 = vmatpush.bf16.msra.mxu0 0
  %134 = vmatpush.bf16.msra.mxu0 0
  %135 = vmatpush.bf16.msra.mxu0 0
  %136 = vmatpush.bf16.msra.mxu0 0
  %137 = vmatpush.bf16.msra.mxu0 %v103
  %138 = vmatpush.bf16.msra.mxu0 %v102
  %139 = vmatmul.bf16.gmra.mxu0 %v108
  %v140 = vpop.f32.mrf.mxu0
  %v141 = vadd.f32 0.0, %v140
  %v142 = vpop.f32.mrf.mxu0
  %v143 = vadd.f32 0.0, %v142
  %144 = vmatmul.bf16.gmra.mxu0 %v111
  %v145 = vpop.f32.mrf.mxu0
  %v146 = vadd.f32 0.0, %v145
  %v147 = vpop.f32.mrf.mxu0
  %v148 = vadd.f32 0.0, %v147
  %149 = vmatmul.bf16.gmra.mxu0 %v114
  %v150 = vpop.f32.mrf.mxu0
  %v151 = vadd.f32 0.0, %v150
  %v152 = vpop.f32.mrf.mxu0
  %v153 = vadd.f32 0.0, %v152
  %154 = vmatmul.bf16.gmra.mxu0 %v117
  %v155 = vpop.f32.mrf.mxu0
  %v156 = vadd.f32 0.0, %v155
  %v157 = vpop.f32.mrf.mxu0
  %v158 = vadd.f32 0.0, %v157
  %159 = vmatmul.bf16.gmra.mxu0 %v120
  %v160 = vpop.f32.mrf.mxu0
  %v161 = vadd.f32 0.0, %v160
  %v162 = vpop.f32.mrf.mxu0
  %v163 = vadd.f32 0.0, %v162
  %164 = vmatmul.bf16.gmra.mxu0 %v123
  %v165 = vpop.f32.mrf.mxu0
  %v166 = vadd.f32 0.0, %v165
  %v167 = vpop.f32.mrf.mxu0
  %v168 = vadd.f32 0.0, %v167
  %169 = vmatmul.bf16.gmra.mxu0 %v126
  %v170 = vpop.f32.mrf.mxu0
  %v171 = vadd.f32 0.0, %v170
  %v172 = vpop.f32.mrf.mxu0
  %v173 = vadd.f32 0.0, %v172
  %174 = vmatmul.bf16.gmra.mxu0 %v129
  %v175 = vpop.f32.mrf.mxu0
  %v176 = vadd.f32 0.0, %v175
  %v177 = vpop.f32.mrf.mxu0
  %v178 = vadd.f32 0.0, %v177
  %179 = vdwg.mxu0
  %v180 = vpack.c.bf16 %v143, %v141
  %v181 = vpack.c.bf16 %v148, %v146
  %v182 = vpack.c.bf16 %v153, %v151
  %v183 = vpack.c.bf16 %v158, %v156
  %v184 = vpack.c.bf16 %v163, %v161
  %v185 = vpack.c.bf16 %v168, %v166
  %v186 = vpack.c.bf16 %v173, %v171
  %v187 = vpack.c.bf16 %v178, %v176
  %v204 = vunpack.c.l.b16 %v18
  %v205 = vunpack.c.l.b16 %v19
  %v206 = vunpack.c.l.b16 %v20
  %v207 = vunpack.c.l.b16 %v21
  %v208 = vunpack.c.l.b16 %v22
  %v209 = vunpack.c.l.b16 %v23
  %v210 = vunpack.c.l.b16 %v24
  %v211 = vunpack.c.l.b16 %v25
  %v212 = vunpack.c.l.b16 %v26
  %v213 = vunpack.c.l.b16 %v27
  %v214 = vunpack.c.l.b16 %v28
  %v215 = vunpack.c.l.b16 %v29
  %v216 = vunpack.c.l.b16 %v30
  %v217 = vunpack.c.l.b16 %v31
  %v218 = vunpack.c.l.b16 %v32
  %v219 = vunpack.c.l.b16 %v33
  %v220 = vpack.c.b16 %v205, %v204
  %v221 = vpack.c.b16 %v207, %v206
  %v222 = vpack.c.b16 %v209, %v208
  %v223 = vpack.c.b16 %v211, %v210
  %v224 = vpack.c.b16 %v213, %v212
  %v225 = vpack.c.b16 %v215, %v214
  %v226 = vpack.c.b16 %v217, %v216
  %v227 = vpack.c.b16 %v219, %v218
  %236 = vmatpush.bf16.msra.mxu0 %v187
  %237 = vmatpush.bf16.msra.mxu0 %v186
  %238 = vmatpush.bf16.msra.mxu0 %v185
  %239 = vmatpush.bf16.msra.mxu0 %v184
  %240 = vmatpush.bf16.msra.mxu0 %v183
  %241 = vmatpush.bf16.msra.mxu0 %v182
  %242 = vmatpush.bf16.msra.mxu0 %v181
  %243 = vmatpush.bf16.msra.mxu0 %v180
  %244 = vmatmul.bf16.gmra.mxu0 %v220
  %v245 = vpop.f32.mrf.mxu0
  %v246 = vadd.f32 0.0, %v245
  %v247 = vpop.f32.mrf.mxu0
  %v248 = vadd.f32 0.0, %v247
  %249 = vmatmul.bf16.gmra.mxu0 %v221
  %v250 = vpop.f32.mrf.mxu0
  %v251 = vadd.f32 0.0, %v250
  %v252 = vpop.f32.mrf.mxu0
  %v253 = vadd.f32 0.0, %v252
  %254 = vmatmul.bf16.gmra.mxu0 %v222
  %v255 = vpop.f32.mrf.mxu0
  %v256 = vadd.f32 0.0, %v255
  %v257 = vpop.f32.mrf.mxu0
  %v258 = vadd.f32 0.0, %v257
  %259 = vmatmul.bf16.gmra.mxu0 %v223
  %v260 = vpop.f32.mrf.mxu0
  %v261 = vadd.f32 0.0, %v260
  %v262 = vpop.f32.mrf.mxu0
  %v263 = vadd.f32 0.0, %v262
  %264 = vmatmul.bf16.gmra.mxu0 %v224
  %v265 = vpop.f32.mrf.mxu0
  %v266 = vadd.f32 0.0, %v265
  %v267 = vpop.f32.mrf.mxu0
  %v268 = vadd.f32 0.0, %v267
  %269 = vmatmul.bf16.gmra.mxu0 %v225
  %v270 = vpop.f32.mrf.mxu0
  %v271 = vadd.f32 0.0, %v270
  %v272 = vpop.f32.mrf.mxu0
  %v273 = vadd.f32 0.0, %v272
  %274 = vmatmul.bf16.gmra.mxu0 %v226
  %v275 = vpop.f32.mrf.mxu0
  %v276 = vadd.f32 0.0, %v275
  %v277 = vpop.f32.mrf.mxu0
  %v278 = vadd.f32 0.0, %v277
  %279 = vmatmul.bf16.gmra.mxu0 %v227
  %v280 = vpop.f32.mrf.mxu0
  %v281 = vadd.f32 0.0, %v280
  %v282 = vpop.f32.mrf.mxu0
  %v283 = vadd.f32 0.0, %v282
  %284 = vdwg.mxu0
  %v285 = vpack.c.bf16 %v246, %v246
  %v286 = vpack.c.bf16 %v248, %v248
  %v287 = vpack.c.bf16 %v251, %v251
  %v288 = vpack.c.bf16 %v253, %v253
  %v289 = vpack.c.bf16 %v256, %v256
  %v290 = vpack.c.bf16 %v258, %v258
  %v291 = vpack.c.bf16 %v261, %v261
  %v292 = vpack.c.bf16 %v263, %v263
  %v293 = vpack.c.bf16 %v266, %v266
  %v294 = vpack.c.bf16 %v268, %v268
  %v295 = vpack.c.bf16 %v271, %v271
  %v296 = vpack.c.bf16 %v273, %v273
  %v297 = vpack.c.bf16 %v276, %v276
  %v298 = vpack.c.bf16 %v278, %v278
  %v299 = vpack.c.bf16 %v281, %v281
  %v300 = vpack.c.bf16 %v283, %v283
  %v301 = vunpack.c.l.bf16 %v285
  %v302 = vunpack.c.l.bf16 %v286
  %v303 = vunpack.c.l.bf16 %v287
  %v304 = vunpack.c.l.bf16 %v288
  %v305 = vunpack.c.l.bf16 %v289
  %v306 = vunpack.c.l.bf16 %v290
  %v307 = vunpack.c.l.bf16 %v291
  %v308 = vunpack.c.l.bf16 %v292
  %v309 = vunpack.c.l.bf16 %v293
  %v310 = vunpack.c.l.bf16 %v294
  %v311 = vunpack.c.l.bf16 %v295
  %v312 = vunpack.c.l.bf16 %v296
  %v313 = vunpack.c.l.bf16 %v297
  %v314 = vunpack.c.l.bf16 %v298
  %v315 = vunpack.c.l.bf16 %v299
  %v316 = vunpack.c.l.bf16 %v300
  %v317 = vmax.f32 %v301, 0.0
  %v318 = vmax.f32 %v302, 0.0
  %v319 = vmax.f32 %v303, 0.0
  %v320 = vmax.f32 %v304, 0.0
  %v321 = vmax.f32 %v305, 0.0
  %v322 = vmax.f32 %v306, 0.0
  %v323 = vmax.f32 %v307, 0.0
  %v324 = vmax.f32 %v308, 0.0
  %v325 = vmax.f32 %v309, 0.0
  %v326 = vmax.f32 %v310, 0.0
  %v327 = vmax.f32 %v311, 0.0
  %v328 = vmax.f32 %v312, 0.0
  %v329 = vmax.f32 %v313, 0.0
  %v330 = vmax.f32 %v314, 0.0
  %v331 = vmax.f32 %v315, 0.0
  %v332 = vmax.f32 %v316, 0.0
  %v333 = vpack.c.bf16 %v318, %v317
  %v334 = vpack.c.bf16 %v320, %v319
  %v335 = vpack.c.bf16 %v322, %v321
  %v336 = vpack.c.bf16 %v324, %v323
  %v337 = vpack.c.bf16 %v326, %v325
  %v338 = vpack.c.bf16 %v328, %v327
  %v339 = vpack.c.bf16 %v330, %v329
  %v340 = vpack.c.bf16 %v332, %v331
  %v341 = vld [vmem:[%s3] sm:$0xf]
  %v342 = vld [vmem:[%s3 + $0x4] sm:$0xf]
  %v343 = vld [vmem:[%s3 + $0x8] sm:$0xf]
  %v344 = vld [vmem:[%s3 + $0xc] sm:$0xf]
  %v349 = vunpack.c.l.b16 %v341
  %v350 = vunpack.c.l.b16 %v342
  %v351 = vunpack.c.l.b16 %v343
  %v352 = vunpack.c.l.b16 %v344
  %v353 = vpack.c.b16 %v350, %v349
  %v354 = vpack.c.b16 %v352, %v351
  %v358 = vsel %vm106, %v333, 0
  %v361 = vsel %vm106, %v334, 0
  %v364 = vsel %vm106, %v335, 0
  %v367 = vsel %vm106, %v336, 0
  %v370 = vsel %vm106, %v337, 0
  %v373 = vsel %vm106, %v338, 0
  %v376 = vsel %vm106, %v339, 0
  %v379 = vsel %vm106, %v340, 0
  %381 = vmatpush.bf16.msra.mxu0 0
  %382 = vmatpush.bf16.msra.mxu0 0
  %383 = vmatpush.bf16.msra.mxu0 0
  %384 = vmatpush.bf16.msra.mxu0 0
  %385 = vmatpush.bf16.msra.mxu0 0
  %386 = vmatpush.bf16.msra.mxu0 0
  %387 = vmatpush.bf16.msra.mxu0 %v354
  %388 = vmatpush.bf16.msra.mxu0 %v353
  %389 = vmatmul.bf16.gmra.mxu0 %v358
  %v390 = vpop.f32.mrf.mxu0
  %v391 = vadd.f32 0.0, %v390
  %v392 = vpop.f32.mrf.mxu0
  %v393 = vadd.f32 0.0, %v392
  %394 = vmatmul.bf16.gmra.mxu0 %v361
  %v395 = vpop.f32.mrf.mxu0
  %v396 = vadd.f32 0.0, %v395
  %v397 = vpop.f32.mrf.mxu0
  %v398 = vadd.f32 0.0, %v397
  %399 = vmatmul.bf16.gmra.mxu0 %v364
  %v400 = vpop.f32.mrf.mxu0
  %v401 = vadd.f32 0.0, %v400
  %v402 = vpop.f32.mrf.mxu0
  %v403 = vadd.f32 0.0, %v402
  %404 = vmatmul.bf16.gmra.mxu0 %v367
  %v405 = vpop.f32.mrf.mxu0
  %v406 = vadd.f32 0.0, %v405
  %v407 = vpop.f32.mrf.mxu0
  %v408 = vadd.f32 0.0, %v407
  %409 = vmatmul.bf16.gmra.mxu0 %v370
  %v410 = vpop.f32.mrf.mxu0
  %v411 = vadd.f32 0.0, %v410
  %v412 = vpop.f32.mrf.mxu0
  %v413 = vadd.f32 0.0, %v412
  %414 = vmatmul.bf16.gmra.mxu0 %v373
  %v415 = vpop.f32.mrf.mxu0
  %v416 = vadd.f32 0.0, %v415
  %v417 = vpop.f32.mrf.mxu0
  %v418 = vadd.f32 0.0, %v417
  %419 = vmatmul.bf16.gmra.mxu0 %v376
  %v420 = vpop.f32.mrf.mxu0
  %v421 = vadd.f32 0.0, %v420
  %v422 = vpop.f32.mrf.mxu0
  %v423 = vadd.f32 0.0, %v422
  %424 = vmatmul.bf16.gmra.mxu0 %v379
  %v425 = vpop.f32.mrf.mxu0
  %v426 = vadd.f32 0.0, %v425
  %v427 = vpop.f32.mrf.mxu0
  %v428 = vadd.f32 0.0, %v427
  %429 = vdwg.mxu0
  %v430 = vpack.c.bf16 %v393, %v391
  %v431 = vpack.c.bf16 %v398, %v396
  %v432 = vpack.c.bf16 %v403, %v401
  %v433 = vpack.c.bf16 %v408, %v406
  %v434 = vpack.c.bf16 %v413, %v411
  %v435 = vpack.c.bf16 %v418, %v416
  %v436 = vpack.c.bf16 %v423, %v421
  %v437 = vpack.c.bf16 %v428, %v426
  %438 = vmatpush.bf16.msra.mxu0 %v437
  %439 = vmatpush.bf16.msra.mxu0 %v436
  %440 = vmatpush.bf16.msra.mxu0 %v435
  %441 = vmatpush.bf16.msra.mxu0 %v434
  %442 = vmatpush.bf16.msra.mxu0 %v433
  %443 = vmatpush.bf16.msra.mxu0 %v432
  %444 = vmatpush.bf16.msra.mxu0 %v431
  %445 = vmatpush.bf16.msra.mxu0 %v430
  %446 = vmatmul.bf16.gmra.mxu0 %v220
  %v447 = vpop.f32.mrf.mxu0
  %v448 = vadd.f32 0.0, %v447
  %v449 = vpop.f32.mrf.mxu0
  %v450 = vadd.f32 0.0, %v449
  %451 = vmatmul.bf16.gmra.mxu0 %v221
  %v452 = vpop.f32.mrf.mxu0
  %v453 = vadd.f32 0.0, %v452
  %v454 = vpop.f32.mrf.mxu0
  %v455 = vadd.f32 0.0, %v454
  %456 = vmatmul.bf16.gmra.mxu0 %v222
  %v457 = vpop.f32.mrf.mxu0
  %v458 = vadd.f32 0.0, %v457
  %v459 = vpop.f32.mrf.mxu0
  %v460 = vadd.f32 0.0, %v459
  %461 = vmatmul.bf16.gmra.mxu0 %v223
  %v462 = vpop.f32.mrf.mxu0
  %v463 = vadd.f32 0.0, %v462
  %v464 = vpop.f32.mrf.mxu0
  %v465 = vadd.f32 0.0, %v464
  %466 = vmatmul.bf16.gmra.mxu0 %v224
  %v467 = vpop.f32.mrf.mxu0
  %v468 = vadd.f32 0.0, %v467
  %v469 = vpop.f32.mrf.mxu0
  %v470 = vadd.f32 0.0, %v469
  %471 = vmatmul.bf16.gmra.mxu0 %v225
  %v472 = vpop.f32.mrf.mxu0
  %v473 = vadd.f32 0.0, %v472
  %v474 = vpop.f32.mrf.mxu0
  %v475 = vadd.f32 0.0, %v474
  %476 = vmatmul.bf16.gmra.mxu0 %v226
  %v477 = vpop.f32.mrf.mxu0
  %v478 = vadd.f32 0.0, %v477
  %v479 = vpop.f32.mrf.mxu0
  %v480 = vadd.f32 0.0, %v479
  %481 = vmatmul.bf16.gmra.mxu0 %v227
  %v482 = vpop.f32.mrf.mxu0
  %v483 = vadd.f32 0.0, %v482
  %v484 = vpop.f32.mrf.mxu0
  %v485 = vadd.f32 0.0, %v484
  %486 = vdwg.mxu0
  %vm487 = vcmask 130048
  %488 = vst.msk [vmem:[%s4] sm:$0xff] %vm487, %v448
  %489 = vst.msk [vmem:[%s4 + $0x8] sm:$0xff] %vm487, %v450
  %490 = vst.msk [vmem:[%s4 + $0x10] sm:$0xff] %vm487, %v453
  %491 = vst.msk [vmem:[%s4 + $0x18] sm:$0xff] %vm487, %v455
  %492 = vst.msk [vmem:[%s4 + $0x20] sm:$0xff] %vm487, %v458
  %493 = vst.msk [vmem:[%s4 + $0x28] sm:$0xff] %vm487, %v460
  %494 = vst.msk [vmem:[%s4 + $0x30] sm:$0xff] %vm487, %v463
  %495 = vst.msk [vmem:[%s4 + $0x38] sm:$0xff] %vm487, %v465
  %496 = vst.msk [vmem:[%s4 + $0x40] sm:$0xff] %vm487, %v468
  %497 = vst.msk [vmem:[%s4 + $0x48] sm:$0xff] %vm487, %v470
  %498 = vst.msk [vmem:[%s4 + $0x50] sm:$0xff] %vm487, %v473
  %499 = vst.msk [vmem:[%s4 + $0x58] sm:$0xff] %vm487, %v475
  %500 = vst.msk [vmem:[%s4 + $0x60] sm:$0xff] %vm487, %v478
  %501 = vst.msk [vmem:[%s4 + $0x68] sm:$0xff] %vm487, %v480
  %502 = vst.msk [vmem:[%s4 + $0x70] sm:$0xff] %vm487, %v483
  %503 = vst.msk [vmem:[%s4 + $0x78] sm:$0xff] %vm487, %v485
  // Predicated region
  $region18: #{gcn_forward.1} parent=0 // pred_check
    _
  $region19: #{gcn_forward.1} parent=0 // pred_check_branch
    %505 = sbr.rel (0) target = $region21
  $region20: #{gcn_forward.1} parent=0 // pred_region
    _
  $region21: #{gcn_forward.1} parent=0 // pred_fallthru
    _
  // Predicated region
  $region22: #{gcn_forward.1} parent=0 // pred_check
    _
  $region23: #{gcn_forward.1} parent=0 // pred_check_branch
    %507 = sbr.rel (0) target = $region25
  $region24: #{gcn_forward.1} parent=0 // pred_region
    _
  $region25: #{gcn_forward.1} parent=0 // pred_fallthru
    _

</llo_original>
